<compile_context>
chip_gen: v7x
topology: tpu7x:2x2x1
jax: 0.10.0
libtpu: 0.0.40
codegen_flags: <defaults>
</compile_context>

<pallas_src>
import functools

import jax
import jax.numpy as jnp
from jax.experimental import pallas as pl
from jax.experimental.pallas import tpu as pltpu


def _round_up(x: int, m: int) -> int:
    return ((x + m - 1) // m) * m


def _cdiv(a: int, b: int) -> int:
    return (a + b - 1) // b


def _largest_divisor(total: int, candidates) -> int | None:
    for c in candidates:
        if c <= total and total % c == 0:
            return c
    return None


# ---------------------------------------------------------------------------
# Kernels
# ---------------------------------------------------------------------------
def _logreg_kernel_multi_k(x_ref, wt_ref, b_ref, o_ref, acc_ref):
    """(M, N, K) grid; f32 VMEM accumulator resident across the K axis."""
    k = pl.program_id(2)

    @pl.when(k == 0)
    def _():
        acc_ref[...] = jnp.zeros_like(acc_ref)

    acc_ref[...] += jnp.dot(
        x_ref[...], wt_ref[...], preferred_element_type=jnp.float32
    )

    @pl.when(k == pl.num_programs(2) - 1)
    def _():
        # Bias add + cast only in the epilogue (hoisted out of the K loop).
        o_ref[...] = (acc_ref[...] + b_ref[...]).astype(o_ref.dtype)


def _logreg_kernel_single_k(x_ref, wt_ref, b_ref, o_ref):
    """(M, N) grid; whole contraction fits one tile -> no scratch accumulator."""
    acc = jnp.dot(x_ref[...], wt_ref[...], preferred_element_type=jnp.float32)
    o_ref[...] = (acc + b_ref[...]).astype(o_ref.dtype)


# ---------------------------------------------------------------------------
# Tile selection
# ---------------------------------------------------------------------------
def _pick_tiles(m: int, k_pad: int, n_pad: int, itemsize: int):
    """Pick (tm, tk, tn) that divide the padded dims and fit scoped VMEM."""
    sub = 16 if itemsize <= 2 else 8  # bf16 packs two rows per sublane

    # Contraction tile: whole K if it fits one big tile, else a 128-aligned
    # divisor of k_pad (no extra K padding beyond 128).
    if k_pad <= 1024:
        tk = k_pad
    else:
        tk = _largest_divisor(
            k_pad, (1024, 896, 768, 640, 512, 448, 384, 320, 256, 192, 128)
        ) or 128

    # Class tile: lane-dense, as wide as possible (fills the 256-wide MXU on
    # v6e/v7x and minimizes re-reads of the X stream).
    if n_pad <= 512:
        tn = n_pad
    else:
        tn = _largest_divisor(n_pad, (512, 384, 256, 128)) or 128

    # Row tile: big tiles for DMA efficiency, but keep >= 2 row tiles when the
    # class axis has a single tile so both v7x TensorCores are busy.
    m_sub = _round_up(m, sub)
    min_i_tiles = 2 if (n_pad // tn == 1 and m_sub >= 256) else 1
    n_i = max(_cdiv(m_sub, 512), min_i_tiles)
    tm = min(512, _round_up(_cdiv(m_sub, n_i), sub))
    m_pad = _round_up(m_sub, tm)
    return m_pad, (tm, tk, tn)


# ---------------------------------------------------------------------------
# Parameter prep (call ONCE at init — not inside the per-step forward)
# ---------------------------------------------------------------------------
def prepare_logreg_params(weight, bias, *, compute_dtype=None):
    """Pad + transpose PyTorch-layout Linear params once.

    weight: (nb_classes, ft_in) -> wt_p: (k_pad, n_pad)  (128-aligned)
    bias:   (nb_classes,)       -> b_p:  (1, n_pad)      (kept f32)
    """
    nb_classes, ft_in = weight.shape
    k_pad = _round_up(ft_in, 128)
    n_pad = _round_up(nb_classes, 128)
    wt_p = jnp.pad(weight, ((0, n_pad - nb_classes), (0, k_pad - ft_in))).T
    if compute_dtype is not None:
        wt_p = wt_p.astype(compute_dtype)
    b_p = jnp.pad(bias.astype(jnp.float32), (0, n_pad - nb_classes)).reshape(1, n_pad)
    return wt_p, b_p


# ---------------------------------------------------------------------------
# Forward
# ---------------------------------------------------------------------------
@functools.partial(jax.jit, static_argnames=("nb_classes", "compute_dtype"))
def logreg_forward_prepared(seq, wt_p, b_p, *, nb_classes, compute_dtype=None):
    """seq @ W.T + b using pre-padded/transposed params from prepare_logreg_params."""
    n_rows, ft_in = seq.shape
    k_pad, n_pad = wt_p.shape
    out_dtype = seq.dtype
    in_dtype = jnp.dtype(compute_dtype) if compute_dtype is not None else jnp.dtype(seq.dtype)
    itemsize = in_dtype.itemsize

    m_pad, (tm, tk, tn) = _pick_tiles(n_rows, k_pad, n_pad, itemsize)

    # Pad/cast X in a single fused pass; skip entirely if already aligned.
    x = seq
    if x.dtype != in_dtype:
        x = x.astype(in_dtype)
    if x.shape != (m_pad, k_pad):
        x = jnp.pad(x, ((0, m_pad - n_rows), (0, k_pad - ft_in)))
    if wt_p.dtype != in_dtype:
        wt_p = wt_p.astype(in_dtype)

    grid_i = m_pad // tm
    grid_j = n_pad // tn
    k_steps = k_pad // tk

    out_itemsize = jnp.dtype(out_dtype).itemsize
    cost = pl.CostEstimate(
        flops=2 * m_pad * k_pad * n_pad,
        transcendentals=0,
        bytes_accessed=(
            grid_j * m_pad * k_pad * itemsize      # X re-streamed once per class tile
            + grid_i * k_pad * n_pad * itemsize    # W re-streamed once per row tile
            + m_pad * n_pad * out_itemsize         # output write
            + 4 * n_pad                            # bias
        ),
    )

    if k_steps == 1:
        # Fast path: no accumulator scratch, 2-D fully-parallel grid.
        grid_spec = pltpu.PrefetchScalarGridSpec(
            num_scalar_prefetch=0,
            grid=(grid_i, grid_j),
            in_specs=[
                pl.BlockSpec((tm, tk), lambda i, j: (i, 0)),   # X tile
                pl.BlockSpec((tk, tn), lambda i, j: (0, j)),   # W^T tile
                pl.BlockSpec((1, tn), lambda i, j: (0, j)),    # bias tile
            ],
            out_specs=pl.BlockSpec((tm, tn), lambda i, j: (i, j)),
            scratch_shapes=[],
        )
        kernel = _logreg_kernel_single_k
        dim_sem = ("parallel", "parallel")
    else:
        grid_spec = pltpu.PrefetchScalarGridSpec(
            num_scalar_prefetch=0,
            grid=(grid_i, grid_j, k_steps),
            in_specs=[
                pl.BlockSpec((tm, tk), lambda i, j, k: (i, k)),   # X tile
                pl.BlockSpec((tk, tn), lambda i, j, k: (k, j)),   # W^T tile
                pl.BlockSpec((1, tn), lambda i, j, k: (0, j)),    # bias tile
            ],
            out_specs=pl.BlockSpec((tm, tn), lambda i, j, k: (i, j)),
            scratch_shapes=[pltpu.VMEM((tm, tn), jnp.float32)],
        )
        kernel = _logreg_kernel_multi_k
        dim_sem = ("parallel", "parallel", "arbitrary")

    out_padded = pl.pallas_call(
        kernel,
        out_shape=jax.ShapeDtypeStruct((m_pad, n_pad), out_dtype),
        grid_spec=grid_spec,
        compiler_params=pltpu.CompilerParams(
            dimension_semantics=dim_sem,
            vmem_limit_bytes=32 * 1024 * 1024,
        ),
        cost_estimate=cost,
    )(x, wt_p, b_p)

    # Slice off row / class padding.
    return out_padded[:n_rows, :nb_classes]


def logreg_forward(seq, weight, bias, *, compute_dtype=None):
    """Convenience path (pads/transposes W per call).

    Prefer: wt_p, b_p = prepare_logreg_params(...) once, then
    logreg_forward_prepared(seq, wt_p, b_p, nb_classes=...) in the hot loop.
    """
    wt_p, b_p = prepare_logreg_params(weight, bias, compute_dtype=compute_dtype)
    return logreg_forward_prepared(
        seq, wt_p, b_p, nb_classes=weight.shape[0], compute_dtype=compute_dtype
    )


def init_logreg_params(key, ft_in, nb_classes):
    """Xavier-uniform weight (torch.nn.init.xavier_uniform_), zero bias."""
    limit = (6.0 / (ft_in + nb_classes)) ** 0.5
    weight = jax.random.uniform(
        key, (nb_classes, ft_in), dtype=jnp.float32, minval=-limit, maxval=limit
    )
    bias = jnp.zeros((nb_classes,), dtype=jnp.float32)
    return weight, bias


if __name__ == "__main__":
    key = jax.random.PRNGKey(0)
    k_w, k_x = jax.random.split(key)

    # Small LogReg-shaped case (single-K fast path).
    N, FT_IN, NB_CLASSES = 8, 32, 16
    weight, bias = init_logreg_params(k_w, FT_IN, NB_CLASSES)
    seq = jax.random.normal(k_x, (N, FT_IN), dtype=jnp.float32)

    wt_p, b_p = prepare_logreg_params(weight, bias)         # hoisted out of forward
    out = jax.block_until_ready(
        logreg_forward_prepared(seq, wt_p, b_p, nb_classes=NB_CLASSES)
    )
    ref = seq @ weight.T + bias
    assert out.shape == (N, NB_CLASSES)
    assert jnp.allclose(out, ref, atol=1e-5, rtol=1e-5)

    # Larger, tile-spanning, ragged shapes (multi-K grid, >=2 row tiles).
    k_w2, k_x2 = jax.random.split(k_x)
    N2, FT2, NC2 = 700, 1100, 40
    w2, b2 = init_logreg_params(k_w2, FT2, NC2)
    x2 = jax.random.normal(k_x2, (N2, FT2), dtype=jnp.float32)
    wt2_p, b2_p = prepare_logreg_params(w2, b2)
    out2 = jax.block_until_ready(
        logreg_forward_prepared(x2, wt2_p, b2_p, nb_classes=NC2)
    )
    ref2 = x2 @ w2.T + b2
    assert out2.shape == (N2, NC2)
    assert jnp.allclose(out2, ref2, atol=1e-4, rtol=1e-4)

    # Optional low-bandwidth mode: bf16 inputs, f32 accumulation + f32 bias add.
    wt2_bf, b2_bf = prepare_logreg_params(w2, b2, compute_dtype=jnp.bfloat16)
    out3 = jax.block_until_ready(
        logreg_forward_prepared(
            x2, wt2_bf, b2_bf, nb_classes=NC2, compute_dtype=jnp.bfloat16
        )
    )
    assert out3.shape == (N2, NC2)
    assert jnp.allclose(out3, ref2, atol=0.5, rtol=0.1)

    print("KERNEL_OK")
</pallas_src>

<mosaic_0001>
module attributes {stable_mosaic.version = 11 : i64} {
  func.func @_logreg_kernel_single_k(%arg0: i32, %arg1: i32, %arg2: memref<8x128xf32, #tpu.memory_space<vmem>>, %arg3: memref<128x128xf32, #tpu.memory_space<vmem>>, %arg4: memref<1x128xf32, #tpu.memory_space<vmem>>, %arg5: memref<8x128xf32, #tpu.memory_space<vmem>>) attributes {dimension_semantics = [#tpu.dimension_semantics<parallel>, #tpu.dimension_semantics<parallel>], iteration_bounds = array<i64: 1, 1>, scalar_prefetch = 0 : i64, scratch_operands = 0 : i64, tpu.core_type = #tpu.core_type<tc>, window_params = [{transform_indices = @transform_0, window_bounds = array<i64: 8, 128>}, {transform_indices = @transform_1, window_bounds = array<i64: 128, 128>}, {transform_indices = @transform_2, window_bounds = array<i64: 1, 128>}, {transform_indices = @transform_3, window_bounds = array<i64: 8, 128>}]} {
    %c0 = arith.constant 0 : index
    %c0_0 = arith.constant 0 : index
    %0 = vector.load %arg2[%c0, %c0_0] : memref<8x128xf32, #tpu.memory_space<vmem>>, vector<8x128xf32>
    %c0_1 = arith.constant 0 : index
    %c0_2 = arith.constant 0 : index
    %1 = vector.load %arg3[%c0_1, %c0_2] : memref<128x128xf32, #tpu.memory_space<vmem>>, vector<128x128xf32>
    %cst = arith.constant dense<0.000000e+00> : vector<8x128xf32>
    %2 = tpu.matmul %0, %1, %cst {dimension_numbers = #tpu.dot_dimension_numbers<[1], [0], [0], [1], [0, 0, 1, 1], [], []>} : vector<8x128xf32>, vector<128x128xf32>, vector<8x128xf32> -> vector<8x128xf32>
    %c0_3 = arith.constant 0 : index
    %c0_4 = arith.constant 0 : index
    %3 = vector.load %arg4[%c0_3, %c0_4] : memref<1x128xf32, #tpu.memory_space<vmem>>, vector<1x128xf32>
    %4 = vector.broadcast %3 : vector<1x128xf32> to vector<8x128xf32>
    %5 = arith.addf %2, %4 : vector<8x128xf32>
    %c0_5 = arith.constant 0 : index
    %c0_6 = arith.constant 0 : index
    %6 = vector.load %arg5[%c0_5, %c0_6] : memref<8x128xf32, #tpu.memory_space<vmem>>, vector<8x128xf32>
    tpu.vector_store %arg5[%c0_5, %c0_6], %5 {strides = array<i32>} : memref<8x128xf32, #tpu.memory_space<vmem>>, vector<8x128xf32>,
    return
  }
  func.func @transform_0(%arg0: i32, %arg1: i32) -> (i32, i32) {
    %c0_i32 = arith.constant 0 : i32
    %c0_i32_0 = arith.constant 0 : i32
    return %arg0, %c0_i32 : i32, i32
  }
  func.func @transform_1(%arg0: i32, %arg1: i32) -> (i32, i32) {
    %c0_i32 = arith.constant 0 : i32
    %c0_i32_0 = arith.constant 0 : i32
    return %c0_i32, %arg1 : i32, i32
  }
  func.func @transform_2(%arg0: i32, %arg1: i32) -> (i32, i32) {
    %c0_i32 = arith.constant 0 : i32
    %c0_i32_0 = arith.constant 0 : i32
    return %c0_i32, %arg1 : i32, i32
  }
  func.func @transform_3(%arg0: i32, %arg1: i32) -> (i32, i32) {
    %c0_i32 = arith.constant 0 : i32
    return %arg0, %arg1 : i32, i32
  }
}

</mosaic_0001>

<llo_original>
// kernel: logreg_forward_prepared.1
$region0: #{logreg_forward_prepared.1}
  #allocation0 [shape = 'u32[]', space=smem, size = 0x4, offset = 0x4, fixed_abs, tag = 'smem constant byte address 0x4 - core index']
  #allocation1 [shape = 'u32[144,128]{1,0:T(1,128)}', space=vmem, size = 0x12000, scoped, tag = 'internal scratch']
  %s0 = inlined_call_operand.vmem [shape: f32[8,128], index: 0, kind: input, shape index: {}]
  %s1 = inlined_call_operand.hbm [shape: f32[128,128], index: 1, kind: input, shape index: {}]
  %s2 = inlined_call_operand.vmem [shape: f32[1,128], index: 2, kind: input, shape index: {}]
  %s3 = inlined_call_operand.hbm [shape: f32[8,128], index: 3, kind: output, shape index: {}]
  %s4 = sld [smem:[#allocation0]]
  $region26: #{logreg_forward_prepared.1} parent=0
    _
  %s6 = ssub.s32 1, %s4
  %s7 = scalar_select 0, %s6, %s4
  $region1: #{logreg_forward_prepared.1} parent=0
    #allocation2 [shape = 'u8[65536]{0}', space=vmem, size = 0x10000, scoped, tag = 'input window, operand 1, single buffered']
    #allocation3 [shape = 's32[1]{0}', space=sflag, size = 0x4, scoped, tag = 'scoped memory for logreg_forward_prepared.1']
    #allocation4 [shape = 's32[1]{0}', space=sflag, size = 0x4, scoped, tag = 'scoped memory for logreg_forward_prepared.1']
    #allocation5 [shape = 'u8[4096]{0}', space=vmem, size = 0x1000, scoped, tag = 'output window, operand 0, single buffered']
    %8 = vsyncpa [#allocation3], 0
    %9 = vsyncpa [#allocation4], 0
    // Predicated region
    $region2: #{logreg_forward_prepared.1} parent=1 // pred_check
      _
    $region3: #{logreg_forward_prepared.1} parent=1 // pred_check_branch
      %11 = sbr.rel (0) target = $region5
    $region4: #{logreg_forward_prepared.1} parent=1 // pred_region
      _
    $region5: #{logreg_forward_prepared.1} parent=1 // pred_fallthru
      _
    // Predicated region
    $region6: #{logreg_forward_prepared.1} parent=1 // pred_check
      _
    $region7: #{logreg_forward_prepared.1} parent=1 // pred_check_branch
      %13 = sbr.rel (0) target = $region9
    $region8: #{logreg_forward_prepared.1} parent=1 // pred_region
      %s15 = ssub.s32 2048, 2048
      %16 = vsyncadd [#allocation3], %s15
      %s17 = sshll.u32 [#allocation2], 4
      %s18 = int_to_ptr.vmem [resolvable:$true] %s17
      %23 = dma.hbm_to_vmem [thread:$0]  %s1, 2048, %s18, [#allocation3], 128, 128, 8
    $region9: #{logreg_forward_prepared.1} parent=1 // pred_fallthru
      _
    // Predicated region
    $region10: #{logreg_forward_prepared.1} parent=1 // pred_check
      _
    $region11: #{logreg_forward_prepared.1} parent=1 // pred_check_branch
      %25 = sbr.rel (0) target = $region13
    $region12: #{logreg_forward_prepared.1} parent=1 // pred_region
      _
    $region13: #{logreg_forward_prepared.1} parent=1 // pred_fallthru
      _
    // Predicated region
    $region14: #{logreg_forward_prepared.1} parent=1 // pred_check
      _
    $region15: #{logreg_forward_prepared.1} parent=1 // pred_check_branch
      %27 = sbr.rel (0) target = $region17
    $region16: #{logreg_forward_prepared.1} parent=1 // pred_region
      %28 = dma.done [#allocation3], 2048
    $region17: #{logreg_forward_prepared.1} parent=1 // pred_fallthru
      _
    %v29 = vld [vmem:[%s0] sm:$0xff]
    %v30 = vld [vmem:[#allocation2] sm:$0xff]
    %v31 = vld [vmem:[#allocation2 + $0x8] sm:$0xff]
    %v32 = vld [vmem:[#allocation2 + $0x10] sm:$0xff]
    %v33 = vld [vmem:[#allocation2 + $0x18] sm:$0xff]
    %v34 = vld [vmem:[#allocation2 + $0x20] sm:$0xff]
    %v35 = vld [vmem:[#allocation2 + $0x28] sm:$0xff]
    %v36 = vld [vmem:[#allocation2 + $0x30] sm:$0xff]
    %v37 = vld [vmem:[#allocation2 + $0x38] sm:$0xff]
    %v38 = vld [vmem:[#allocation2 + $0x40] sm:$0xff]
    %v39 = vld [vmem:[#allocation2 + $0x48] sm:$0xff]
    %v40 = vld [vmem:[#allocation2 + $0x50] sm:$0xff]
    %v41 = vld [vmem:[#allocation2 + $0x58] sm:$0xff]
    %v42 = vld [vmem:[#allocation2 + $0x60] sm:$0xff]
    %v43 = vld [vmem:[#allocation2 + $0x68] sm:$0xff]
    %v44 = vld [vmem:[#allocation2 + $0x70] sm:$0xff]
    %v45 = vld [vmem:[#allocation2 + $0x78] sm:$0xff]
    %v46 = vld [vmem:[%s2] sm:$0x1]
    %v48 = vlaneseq
    %v49 = vshrl.u32 %v48, 7
    %v50 = vsub.s32 0, %v49
    %v51 = vrot.slane %v46, %v50
    %53 = vmatprep.subr.mxu0 0.0
    %54 = vmatpush1.msra.mxu0 %v30
    %55 = vmatprep.subr.mxu0 0.0
    %56 = vmatpush1.msra.mxu0 %v31
    %57 = vmatprep.subr.mxu0 0.0
    %58 = vmatpush1.msra.mxu0 %v32
    %59 = vmatprep.subr.mxu0 0.0
    %60 = vmatpush1.msra.mxu0 %v33
    %61 = vmatprep.subr.mxu0 0.0
    %62 = vmatpush1.msra.mxu0 %v34
    %63 = vmatprep.subr.mxu0 0.0
    %64 = vmatpush1.msra.mxu0 %v35
    %65 = vmatprep.subr.mxu0 0.0
    %66 = vmatpush1.msra.mxu0 %v36
    %67 = vmatprep.subr.mxu0 0.0
    %68 = vmatpush1.msra.mxu0 %v37
    %69 = vmatprep.subr.mxu0 0.0
    %70 = vmatpush1.msra.mxu0 %v38
    %71 = vmatprep.subr.mxu0 0.0
    %72 = vmatpush1.msra.mxu0 %v39
    %73 = vmatprep.subr.mxu0 0.0
    %74 = vmatpush1.msra.mxu0 %v40
    %75 = vmatprep.subr.mxu0 0.0
    %76 = vmatpush1.msra.mxu0 %v41
    %77 = vmatprep.subr.mxu0 0.0
    %78 = vmatpush1.msra.mxu0 %v42
    %79 = vmatprep.subr.mxu0 0.0
    %80 = vmatpush1.msra.mxu0 %v43
    %81 = vmatprep.subr.mxu0 0.0
    %82 = vmatpush1.msra.mxu0 %v44
    %83 = vmatprep.subr.mxu0 0.0
    %84 = vmatpush1.msra.mxu0 %v45
    %85 = vmatprep.subr.mxu0 0.0
    %86 = vmatpush1.msra.mxu0 0.0
    %87 = vmatprep.subr.mxu0 0.0
    %88 = vmatpush1.msra.mxu0 0.0
    %89 = vmatprep.subr.mxu0 0.0
    %90 = vmatpush1.msra.mxu0 0.0
    %91 = vmatprep.subr.mxu0 0.0
    %92 = vmatpush1.msra.mxu0 0.0
    %93 = vmatprep.subr.mxu0 0.0
    %94 = vmatpush1.msra.mxu0 0.0
    %95 = vmatprep.subr.mxu0 0.0
    %96 = vmatpush1.msra.mxu0 0.0
    %97 = vmatprep.subr.mxu0 0.0
    %98 = vmatpush1.msra.mxu0 0.0
    %99 = vmatprep.subr.mxu0 0.0
    %100 = vmatpush1.msra.mxu0 0.0
    %101 = vmatprep.subr.mxu0 0.0
    %102 = vmatpush1.msra.mxu0 0.0
    %103 = vmatprep.subr.mxu0 0.0
    %104 = vmatpush1.msra.mxu0 0.0
    %105 = vmatprep.subr.mxu0 0.0
    %106 = vmatpush1.msra.mxu0 0.0
    %107 = vmatprep.subr.mxu0 0.0
    %108 = vmatpush1.msra.mxu0 0.0
    %109 = vmatprep.subr.mxu0 0.0
    %110 = vmatpush1.msra.mxu0 0.0
    %111 = vmatprep.subr.mxu0 0.0
    %112 = vmatpush1.msra.mxu0 0.0
    %113 = vmatprep.subr.mxu0 0.0
    %114 = vmatpush1.msra.mxu0 0.0
    %115 = vmatprep.subr.mxu0 0.0
    %116 = vmatpush1.msra.mxu0 0.0
    %117 = vmatprep.mubr.f32.mxu0 0.0
    %118 = vmatmul.mubr.f32.gmra.mrb[0].mxu0 %v29
    %v119 = vpop.f32.mrb[0].mxu0
    %v120 = vadd.f32 %v51, %v119
    %v121 = vpop.f32.mrb[0].mxu0
    %122 = vdwg.mxu0
    %123 = vst [vmem:[#allocation5] sm:$0xff] %v120
    // Predicated region
    $region18: #{logreg_forward_prepared.1} parent=1 // pred_check
      _
    $region19: #{logreg_forward_prepared.1} parent=1 // pred_check_branch
      %125 = sbr.rel (0) target = $region21
    $region20: #{logreg_forward_prepared.1} parent=1 // pred_region
      %s127 = ssub.s32 128, 128
      %128 = vsyncadd [#allocation4], %s127
      %s130 = sshll.u32 [#allocation5], 4
      %s131 = int_to_ptr.vmem [resolvable:$true] %s130
      %133 = dma.vmem_to_hbm [thread:$0]  %s131, 128, %s3, [#allocation4]
    $region21: #{logreg_forward_prepared.1} parent=1 // pred_fallthru
      _
    // Predicated region
    $region22: #{logreg_forward_prepared.1} parent=1 // pred_check
      _
    $region23: #{logreg_forward_prepared.1} parent=1 // pred_check_branch
      %135 = sbr.rel (0) target = $region25
    $region24: #{logreg_forward_prepared.1} parent=1 // pred_region
      %136 = dma.done [#allocation4], 128
    $region25: #{logreg_forward_prepared.1} parent=1 // pred_fallthru
      _
    %137 = vsyncpa [#allocation3], 1
    %138 = vsyncpa [#allocation4], 1

</llo_original>
